<compile_context>
chip_gen: v6e
topology: v6e:2x2x1
jax: 0.10.0
libtpu: 0.0.40
codegen_flags: <defaults>
</compile_context>

<pallas_src>
import jax
import jax.numpy as jnp
from jax.experimental import pallas as pl
from jax.experimental.pallas import tpu as pltpu


def _round_up(x, m):
    return (x + m - 1) // m * m


def _vmem_capacity_bytes():
    try:
        return int(pltpu.get_tpu_info().vmem_capacity_bytes)
    except Exception:
        return 64 * 1024 * 1024  # conservative fallback (v7x per-TC VMEM)


def _default_tiles(vmem_cap):
    if vmem_cap >= 100 * 1024 * 1024:
        # v5e / v6e: 128 MiB VMEM.  Big tiles push v6e past its ~650 flop/B
        # HBM/MXU break-even; footprint (f32 worst case) ~64 MiB, fits.
        return 1024, 1024, 2048
    # v7x: 64 MiB VMEM per TC but ~3.2 TB/s HBM (break-even ~310 flop/B);
    # tm=512/tn=1024 is already compute-bound, keep footprint < ~48 MiB.
    return 512, 1024, 1024


def _pick_tile(full, want, quantum):
    """Tile for a dimension of length `full`.  Prefers a tile that divides
    `full` exactly (avoids a per-call HBM jnp.pad copy of the weights); pads
    only when no reasonable divisor exists.  Returns (tile, padded_len)."""
    if full <= want:
        return full, full                       # one full-extent block
    want = _round_up(want, quantum)
    t = want
    while t >= max(quantum, want // 2):
        if full % t == 0:
            return t, full
        t -= quantum
    return want, _round_up(full, want)


def _swiglu_kernel(x_ref, w1_ref, w2_ref, o_ref, acc1_ref, acc2_ref):
    # x_ref : (tm, tk)        token tile
    # w*_ref: (tk, tn)        weight tiles, already transposed to (dim, hidden)
    # o_ref : (tm, tn)        output tile (resident across the K axis)
    # acc*  : (tm, tn) f32    accumulators for x@W1^T and x@W2^T
    k = pl.program_id(2)

    @pl.when(k == 0)
    def _init():
        acc1_ref[...] = jnp.zeros_like(acc1_ref)
        acc2_ref[...] = jnp.zeros_like(acc2_ref)

    x = x_ref[...]
    acc1_ref[...] += jnp.dot(x, w1_ref[...], preferred_element_type=jnp.float32)
    acc2_ref[...] += jnp.dot(x, w2_ref[...], preferred_element_type=jnp.float32)

    @pl.when(k == pl.num_programs(2) - 1)
    def _finalize():
        h1 = acc1_ref[...]
        gate = h1 * jax.nn.sigmoid(h1)           # SiLU in f32 (EUP slot, hidden under MXU)
        o_ref[...] = (gate * acc2_ref[...]).astype(o_ref.dtype)


def swiglu_pallas(x, w1, w2, *, tm=None, tn=None, tk=None, compute_dtype=None,
                  weights_transposed=False):
    """x: (..., dim).  w1, w2: (hidden, dim) (PyTorch nn.Linear layout), or
    (dim, hidden) if weights_transposed=True.  For best perf keep x/w in bf16
    upstream (compute_dtype left as None then does no per-call casting)."""
    orig_shape = x.shape
    dim = orig_shape[-1]
    if weights_transposed:
        wdim, hidden = w1.shape
    else:
        hidden, wdim = w1.shape
    assert wdim == dim and w2.shape == w1.shape

    out_dtype = x.dtype
    x2d = x.reshape(-1, dim)
    M = x2d.shape[0]

    # One-time (wrapper-side) transpose to (dim, hidden): keeps the MXU feed
    # canonical; the kernel never transposes weight tiles on the XLU.
    w1t = w1 if weights_transposed else w1.T
    w2t = w2 if weights_transposed else w2.T

    cdtype = jnp.dtype(compute_dtype) if compute_dtype is not None else \
        jnp.result_type(x2d.dtype, w1t.dtype, w2t.dtype)
    if x2d.dtype != cdtype:
        x2d = x2d.astype(cdtype)
    if w1t.dtype != cdtype:
        w1t = w1t.astype(cdtype)
    if w2t.dtype != cdtype:
        w2t = w2t.astype(cdtype)

    vmem_cap = _vmem_capacity_bytes()
    dtm, dtn, dtk = _default_tiles(vmem_cap)
    tm = dtm if tm is None else tm
    tn = dtn if tn is None else tn
    tk = dtk if tk is None else tk

    sub = 16 if jnp.dtype(cdtype).itemsize == 2 else 8  # bf16 packs 2 rows/sublane

    # --- tile sizes ------------------------------------------------------------
    if M <= tm:
        tm_ = _round_up(max(M, 1), sub)
        M_pad = tm_
    else:
        tm_ = _round_up(tm, sub)
        M_pad = _round_up(M, tm_)
    tk_, dim_pad = _pick_tile(dim, tk, 128)      # lane dim of x / sublane dim of w
    tn_, hid_pad = _pick_tile(hidden, tn, 128)   # lane dim of w / output

    # --- zero-pad ragged shapes (padding contributes 0 to the accumulation) ----
    if M_pad != M:
        x2d = jnp.pad(x2d, ((0, M_pad - M), (0, 0)))
    if dim_pad != dim:
        x2d = jnp.pad(x2d, ((0, 0), (0, dim_pad - dim)))
        w1t = jnp.pad(w1t, ((0, dim_pad - dim), (0, 0)))
        w2t = jnp.pad(w2t, ((0, dim_pad - dim), (0, 0)))
    if hid_pad != hidden:
        w1t = jnp.pad(w1t, ((0, 0), (0, hid_pad - hidden)))
        w2t = jnp.pad(w2t, ((0, 0), (0, hid_pad - hidden)))

    # Grid: hidden outermost so a v7x megacore split lands on the weight columns
    # (halves per-chip weight HBM traffic); K (contraction) last / "arbitrary".
    grid = (hid_pad // tn_, M_pad // tm_, dim_pad // tk_)

    # --- VMEM budget: double-buffered x/w/out + 2 f32 accumulators -------------
    in_b = jnp.dtype(cdtype).itemsize
    out_b = jnp.dtype(out_dtype).itemsize
    est = (2 * tm_ * tk_ * in_b           # x tile (double-buffered)
           + 2 * 2 * tk_ * tn_ * in_b     # two weight tiles (double-buffered)
           + 2 * tm_ * tn_ * out_b        # output tile (double-buffered)
           + 2 * tm_ * tn_ * 4)           # f32 accumulators
    vmem_limit = int(min(int(0.8 * vmem_cap),
                         max(32 * 1024 * 1024, int(1.35 * est) + (4 << 20))))

    out2d = pl.pallas_call(
        _swiglu_kernel,
        out_shape=jax.ShapeDtypeStruct((M_pad, hid_pad), out_dtype),
        grid_spec=pltpu.PrefetchScalarGridSpec(
            num_scalar_prefetch=0,
            grid=grid,
            in_specs=[
                pl.BlockSpec((tm_, tk_), lambda j, i, k: (i, k)),
                pl.BlockSpec((tk_, tn_), lambda j, i, k: (k, j)),
                pl.BlockSpec((tk_, tn_), lambda j, i, k: (k, j)),
            ],
            out_specs=pl.BlockSpec((tm_, tn_), lambda j, i, k: (i, j)),
            scratch_shapes=[
                pltpu.VMEM((tm_, tn_), jnp.float32),
                pltpu.VMEM((tm_, tn_), jnp.float32),
            ],
        ),
        compiler_params=pltpu.CompilerParams(
            dimension_semantics=("parallel", "parallel", "arbitrary"),
            vmem_limit_bytes=vmem_limit,
        ),
    )(x2d, w1t, w2t)

    out2d = out2d[:M, :hidden]
    return out2d.reshape(*orig_shape[:-1], hidden)


def swiglu_ref(x, w1, w2):
    h1 = jnp.einsum("...d,hd->...h", x.astype(jnp.float32), w1.astype(jnp.float32),
                    precision=jax.lax.Precision.HIGHEST)
    h2 = jnp.einsum("...d,hd->...h", x.astype(jnp.float32), w2.astype(jnp.float32),
                    precision=jax.lax.Precision.HIGHEST)
    return jax.nn.sigmoid(h1) * h1 * h2


if __name__ == "__main__":
    key = jax.random.PRNGKey(0)
    kx, k1, k2 = jax.random.split(key, 3)

    # 1) Small shapes consistent with the module (hidden_dim defaults to dim * 2).
    batch, seq, dim = 2, 8, 32
    hidden = dim * 2
    x = jax.random.normal(kx, (batch, seq, dim), dtype=jnp.float32)
    w1 = jax.random.normal(k1, (hidden, dim), dtype=jnp.float32) * 0.05
    w2 = jax.random.normal(k2, (hidden, dim), dtype=jnp.float32) * 0.05

    out = jax.block_until_ready(swiglu_pallas(x, w1, w2))
    ref = swiglu_ref(x, w1, w2)
    assert out.shape == (batch, seq, hidden)
    assert jnp.allclose(out, ref, atol=2e-3, rtol=2e-2)

    # 2) Tiled M/N/K path with ragged M (row padding), divisor-picked N/K tiles.
    M2, dim2, hid2 = 200, 256, 384
    x2 = jax.random.normal(kx, (M2, dim2), dtype=jnp.float32)
    w1b = jax.random.normal(k1, (hid2, dim2), dtype=jnp.float32) * 0.02
    w2b = jax.random.normal(k2, (hid2, dim2), dtype=jnp.float32) * 0.02
    out2 = jax.block_until_ready(
        swiglu_pallas(x2, w1b, w2b, tm=128, tn=128, tk=128))
    ref2 = swiglu_ref(x2, w1b, w2b)
    assert out2.shape == (M2, hid2)
    assert jnp.allclose(out2, ref2, atol=3e-3, rtol=2e-2)

    # 3) bf16 fast path: activations + weights already stored in bf16 upstream
    #    (no per-call casts); accumulation / SiLU stay f32 inside the kernel.
    out3 = jax.block_until_ready(
        swiglu_pallas(x2.astype(jnp.bfloat16),
                      w1b.astype(jnp.bfloat16),
                      w2b.astype(jnp.bfloat16)))
    assert out3.shape == (M2, hid2)
    assert jnp.allclose(out3.astype(jnp.float32), ref2, atol=2e-2, rtol=1e-1)

    print("KERNEL_OK")
</pallas_src>

<mosaic_0001>
module attributes {stable_mosaic.version = 11 : i64} {
  func.func @_swiglu_kernel(%arg0: i32, %arg1: i32, %arg2: i32, %arg3: memref<16x32xf32, #tpu.memory_space<vmem>>, %arg4: memref<32x64xf32, #tpu.memory_space<vmem>>, %arg5: memref<32x64xf32, #tpu.memory_space<vmem>>, %arg6: memref<16x64xf32, #tpu.memory_space<vmem>>, %arg7: memref<16x64xf32, #tpu.memory_space<vmem>>, %arg8: memref<16x64xf32, #tpu.memory_space<vmem>>) attributes {dimension_semantics = [#tpu.dimension_semantics<parallel>, #tpu.dimension_semantics<parallel>, #tpu.dimension_semantics<arbitrary>], iteration_bounds = array<i64: 1, 1, 1>, scalar_prefetch = 0 : i64, scratch_operands = 2 : i64, tpu.core_type = #tpu.core_type<tc>, window_params = [{transform_indices = @transform_0, window_bounds = array<i64: 16, 32>}, {transform_indices = @transform_1, window_bounds = array<i64: 32, 64>}, {transform_indices = @transform_2, window_bounds = array<i64: 32, 64>}, {transform_indices = @transform_3, window_bounds = array<i64: 16, 64>}]} {
    %c0_i32 = arith.constant 0 : i32
    %0 = arith.cmpi eq, %arg2, %c0_i32 : i32
    %1 = arith.extui %0 : i1 to i32
    %c0_i32_0 = arith.constant 0 : i32
    %2 = arith.cmpi ne, %1, %c0_i32_0 : i32
    scf.if %2 {
      %cst_17 = arith.constant 0.000000e+00 : f32
      %17 = vector.broadcast %cst_17 : f32 to vector<16x64xf32>
      %c0_18 = arith.constant 0 : index
      %c0_19 = arith.constant 0 : index
      %18 = vector.load %arg7[%c0_18, %c0_19] : memref<16x64xf32, #tpu.memory_space<vmem>>, vector<16x64xf32>
      tpu.vector_store %arg7[%c0_18, %c0_19], %17 {strides = array<i32>} : memref<16x64xf32, #tpu.memory_space<vmem>>, vector<16x64xf32>,
      %cst_20 = arith.constant 0.000000e+00 : f32
      %19 = vector.broadcast %cst_20 : f32 to vector<16x64xf32>
      %c0_21 = arith.constant 0 : index
      %c0_22 = arith.constant 0 : index
      %20 = vector.load %arg8[%c0_21, %c0_22] : memref<16x64xf32, #tpu.memory_space<vmem>>, vector<16x64xf32>
      tpu.vector_store %arg8[%c0_21, %c0_22], %19 {strides = array<i32>} : memref<16x64xf32, #tpu.memory_space<vmem>>, vector<16x64xf32>,
    } else {
    }
    %c0 = arith.constant 0 : index
    %c0_1 = arith.constant 0 : index
    %3 = vector.load %arg3[%c0, %c0_1] : memref<16x32xf32, #tpu.memory_space<vmem>>, vector<16x32xf32>
    %c0_2 = arith.constant 0 : index
    %c0_3 = arith.constant 0 : index
    %4 = vector.load %arg7[%c0_2, %c0_3] : memref<16x64xf32, #tpu.memory_space<vmem>>, vector<16x64xf32>
    %c0_4 = arith.constant 0 : index
    %c0_5 = arith.constant 0 : index
    %5 = vector.load %arg4[%c0_4, %c0_5] : memref<32x64xf32, #tpu.memory_space<vmem>>, vector<32x64xf32>
    %cst = arith.constant dense<0.000000e+00> : vector<16x64xf32>
    %6 = tpu.matmul %3, %5, %cst {dimension_numbers = #tpu.dot_dimension_numbers<[1], [0], [0], [1], [0, 0, 1, 1], [], []>} : vector<16x32xf32>, vector<32x64xf32>, vector<16x64xf32> -> vector<16x64xf32>
    %7 = arith.addf %4, %6 : vector<16x64xf32>
    %c0_6 = arith.constant 0 : index
    %c0_7 = arith.constant 0 : index
    %8 = vector.load %arg7[%c0_6, %c0_7] : memref<16x64xf32, #tpu.memory_space<vmem>>, vector<16x64xf32>
    tpu.vector_store %arg7[%c0_6, %c0_7], %7 {strides = array<i32>} : memref<16x64xf32, #tpu.memory_space<vmem>>, vector<16x64xf32>,
    %c0_8 = arith.constant 0 : index
    %c0_9 = arith.constant 0 : index
    %9 = vector.load %arg8[%c0_8, %c0_9] : memref<16x64xf32, #tpu.memory_space<vmem>>, vector<16x64xf32>
    %c0_10 = arith.constant 0 : index
    %c0_11 = arith.constant 0 : index
    %10 = vector.load %arg5[%c0_10, %c0_11] : memref<32x64xf32, #tpu.memory_space<vmem>>, vector<32x64xf32>
    %cst_12 = arith.constant dense<0.000000e+00> : vector<16x64xf32>
    %11 = tpu.matmul %3, %10, %cst_12 {dimension_numbers = #tpu.dot_dimension_numbers<[1], [0], [0], [1], [0, 0, 1, 1], [], []>} : vector<16x32xf32>, vector<32x64xf32>, vector<16x64xf32> -> vector<16x64xf32>
    %12 = arith.addf %9, %11 : vector<16x64xf32>
    %c0_13 = arith.constant 0 : index
    %c0_14 = arith.constant 0 : index
    %13 = vector.load %arg8[%c0_13, %c0_14] : memref<16x64xf32, #tpu.memory_space<vmem>>, vector<16x64xf32>
    tpu.vector_store %arg8[%c0_13, %c0_14], %12 {strides = array<i32>} : memref<16x64xf32, #tpu.memory_space<vmem>>, vector<16x64xf32>,
    %c0_i32_15 = arith.constant 0 : i32
    %14 = arith.cmpi eq, %arg2, %c0_i32_15 : i32
    %15 = arith.extui %14 : i1 to i32
    %c0_i32_16 = arith.constant 0 : i32
    %16 = arith.cmpi ne, %15, %c0_i32_16 : i32
    scf.if %16 {
      %c0_17 = arith.constant 0 : index
      %c0_18 = arith.constant 0 : index
      %17 = vector.load %arg7[%c0_17, %c0_18] : memref<16x64xf32, #tpu.memory_space<vmem>>, vector<16x64xf32>
      %18 = arith.negf %17 : vector<16x64xf32>
      %19 = math.exp %18 : vector<16x64xf32>
      %cst_19 = arith.constant 1.000000e+00 : f32
      %20 = vector.broadcast %cst_19 : f32 to vector<16x64xf32>
      %21 = arith.addf %20, %19 : vector<16x64xf32>
      %22 = arith.divf %20, %21 : vector<16x64xf32>
      %23 = arith.mulf %17, %22 : vector<16x64xf32>
      %c0_20 = arith.constant 0 : index
      %c0_21 = arith.constant 0 : index
      %24 = vector.load %arg8[%c0_20, %c0_21] : memref<16x64xf32, #tpu.memory_space<vmem>>, vector<16x64xf32>
      %25 = arith.mulf %23, %24 : vector<16x64xf32>
      %c0_22 = arith.constant 0 : index
      %c0_23 = arith.constant 0 : index
      %26 = vector.load %arg6[%c0_22, %c0_23] : memref<16x64xf32, #tpu.memory_space<vmem>>, vector<16x64xf32>
      tpu.vector_store %arg6[%c0_22, %c0_23], %25 {strides = array<i32>} : memref<16x64xf32, #tpu.memory_space<vmem>>, vector<16x64xf32>,
    } else {
    }
    return
  }
  func.func @transform_0(%arg0: i32, %arg1: i32, %arg2: i32) -> (i32, i32) {
    %c0_i32 = arith.constant 0 : i32
    return %arg1, %arg2 : i32, i32
  }
  func.func @transform_1(%arg0: i32, %arg1: i32, %arg2: i32) -> (i32, i32) {
    %c0_i32 = arith.constant 0 : i32
    return %arg2, %arg0 : i32, i32
  }
  func.func @transform_2(%arg0: i32, %arg1: i32, %arg2: i32) -> (i32, i32) {
    %c0_i32 = arith.constant 0 : i32
    return %arg2, %arg0 : i32, i32
  }
  func.func @transform_3(%arg0: i32, %arg1: i32, %arg2: i32) -> (i32, i32) {
    %c0_i32 = arith.constant 0 : i32
    return %arg1, %arg0 : i32, i32
  }
}

</mosaic_0001>

<llo_original>
// kernel: tpu_custom_call.1
$region0: #{tpu_custom_call.1}
  #allocation0 [shape = 'u32[]', space=smem, size = 0x4, offset = 0x4, fixed_abs, tag = 'smem constant byte address 0x4 - core index']
  #allocation1 [shape = 'u32[144,128]{1,0:T(1,128)}', space=vmem, size = 0x12000, scoped, tag = 'internal scratch']
  #allocation2 [shape = 'f32[16,64]{1,0:T(8,128)}', space=vmem, size = 0x2000, scoped, tag = 'scratch operand']
  #allocation3 [shape = 'f32[16,64]{1,0:T(8,128)}', space=vmem, size = 0x2000, scoped, tag = 'scratch operand']
  %s0 = inlined_call_operand.hbm [shape: f32[16,32], index: 0, kind: input, shape index: {}]
  %s1 = inlined_call_operand.hbm [shape: f32[32,64], index: 1, kind: input, shape index: {}]
  %s2 = inlined_call_operand.hbm [shape: f32[32,64], index: 2, kind: input, shape index: {}]
  %s3 = inlined_call_operand.hbm [shape: f32[16,64], index: 3, kind: output, shape index: {}]
  %s4 = sld [smem:[#allocation0]]
  $region42: #{tpu_custom_call.1} parent=0
    _
  %s6 = ssub.s32 1, %s4
  %s7 = scalar_select 0, %s6, %s4
  $region1: #{tpu_custom_call.1} parent=0
    #allocation4 [shape = 'u8[8192]{0}', space=vmem, size = 0x2000, scoped, tag = 'input window, operand 0, single buffered']
    #allocation5 [shape = 's32[1]{0}', space=sflag, size = 0x4, scoped, tag = 'scoped memory for tpu_custom_call.1']
    #allocation6 [shape = 's32[1]{0}', space=sflag, size = 0x4, scoped, tag = 'scoped memory for tpu_custom_call.1']
    #allocation7 [shape = 'u8[16384]{0}', space=vmem, size = 0x4000, scoped, tag = 'input window, operand 1, single buffered']
    #allocation8 [shape = 's32[1]{0}', space=sflag, size = 0x4, scoped, tag = 'scoped memory for tpu_custom_call.1']
    #allocation9 [shape = 'u8[16384]{0}', space=vmem, size = 0x4000, scoped, tag = 'input window, operand 2, single buffered']
    #allocation10 [shape = 'u8[8192]{0}', space=vmem, size = 0x2000, scoped, tag = 'output window, operand 0, single buffered']
    %8 = vsyncpa [#allocation5], 0
    %9 = vsyncpa [#allocation8], 0
    %10 = vsyncpa [#allocation6], 0
    // Predicated region
    $region2: #{tpu_custom_call.1} parent=1 // pred_check
      _
    $region3: #{tpu_custom_call.1} parent=1 // pred_check_branch
      %12 = sbr.rel (0) target = $region5
    $region4: #{tpu_custom_call.1} parent=1 // pred_region
      %s14 = ssub.s32 256, 256
      %15 = vsyncadd [#allocation5], %s14
      %s16 = sshll.u32 [#allocation4], 4
      %s17 = int_to_ptr.vmem [resolvable:$true] %s16
      %22 = dma.hbm_to_vmem [thread:$0]  %s0, 256, %s17, [#allocation5], 128, 128, 8
    $region5: #{tpu_custom_call.1} parent=1 // pred_fallthru
      _
    // Predicated region
    $region6: #{tpu_custom_call.1} parent=1 // pred_check
      _
    $region7: #{tpu_custom_call.1} parent=1 // pred_check_branch
      %24 = sbr.rel (0) target = $region9
    $region8: #{tpu_custom_call.1} parent=1 // pred_region
      %s26 = ssub.s32 512, 512
      %27 = vsyncadd [#allocation8], %s26
      %s28 = sshll.u32 [#allocation7], 4
      %s29 = int_to_ptr.vmem [resolvable:$true] %s28
      %34 = dma.hbm_to_vmem [thread:$0]  %s1, 512, %s29, [#allocation8], 128, 128, 8
    $region9: #{tpu_custom_call.1} parent=1 // pred_fallthru
      _
    // Predicated region
    $region10: #{tpu_custom_call.1} parent=1 // pred_check
      _
    $region11: #{tpu_custom_call.1} parent=1 // pred_check_branch
      %36 = sbr.rel (0) target = $region13
    $region12: #{tpu_custom_call.1} parent=1 // pred_region
      %s38 = ssub.s32 512, 512
      %39 = vsyncadd [#allocation8], %s38
      %s40 = sshll.u32 [#allocation9], 4
      %s41 = int_to_ptr.vmem [resolvable:$true] %s40
      %46 = dma.hbm_to_vmem [thread:$0]  %s2, 512, %s41, [#allocation8], 128, 128, 8
    $region13: #{tpu_custom_call.1} parent=1 // pred_fallthru
      _
    // Predicated region
    $region14: #{tpu_custom_call.1} parent=1 // pred_check
      _
    $region15: #{tpu_custom_call.1} parent=1 // pred_check_branch
      %48 = sbr.rel (0) target = $region17
    $region16: #{tpu_custom_call.1} parent=1 // pred_region
      %49 = dma.done [#allocation5], 256
    $region17: #{tpu_custom_call.1} parent=1 // pred_fallthru
      _
    // Predicated region
    $region18: #{tpu_custom_call.1} parent=1 // pred_check
      _
    $region19: #{tpu_custom_call.1} parent=1 // pred_check_branch
      %51 = sbr.rel (0) target = $region21
    $region20: #{tpu_custom_call.1} parent=1 // pred_region
      %52 = dma.done [#allocation8], 512
    $region21: #{tpu_custom_call.1} parent=1 // pred_fallthru
      _
    // Predicated region
    $region22: #{tpu_custom_call.1} parent=1 // pred_check
      _
    $region23: #{tpu_custom_call.1} parent=1 // pred_check_branch
      %54 = sbr.rel (0) target = $region25
    $region24: #{tpu_custom_call.1} parent=1 // pred_region
      %55 = dma.done [#allocation8], 512
    $region25: #{tpu_custom_call.1} parent=1 // pred_fallthru
      _
    %p56 = scmp.eq.s32.totalorder 0, 0
    // Predicated region
    $region26: #{tpu_custom_call.1} parent=1 // pred_check
      %p57 = pneg %p56
    $region27: #{tpu_custom_call.1} parent=1 // pred_check_branch
      %59 = sbr.rel (%p57) target = $region29
    $region28: #{tpu_custom_call.1} parent=1 // pred_region
      %vm60 = vcmask 523264
      %61 = vst.msk [vmem:[#allocation2] sm:$0xff] %vm60, 0.0
      %62 = vst.msk [vmem:[#allocation2 + $0x8] sm:$0xff] %vm60, 0.0
      %63 = vst.msk [vmem:[#allocation3] sm:$0xff] %vm60, 0.0
      %64 = vst.msk [vmem:[#allocation3 + $0x8] sm:$0xff] %vm60, 0.0
    $region29: #{tpu_custom_call.1} parent=1 // pred_fallthru
      _
    %v65 = vld [vmem:[#allocation4] sm:$0xff]
    %v66 = vld [vmem:[#allocation4 + $0x8] sm:$0xff]
    %v67 = vld [vmem:[#allocation2] sm:$0xff]
    %v68 = vld [vmem:[#allocation2 + $0x8] sm:$0xff]
    %v69 = vld [vmem:[#allocation7] sm:$0xff]
    %v70 = vld [vmem:[#allocation7 + $0x8] sm:$0xff]
    %v71 = vld [vmem:[#allocation7 + $0x10] sm:$0xff]
    %v72 = vld [vmem:[#allocation7 + $0x18] sm:$0xff]
    %vm73 = vcmask 261120
    %v75 = vsel %vm73, %v65, 0
    %v78 = vsel %vm73, %v66, 0
    %80 = vmatprep.subr.mxu0 0.0
    %81 = vmatpush1.msra.mxu0 0.0
    %82 = vmatprep.subr.mxu0 0.0
    %83 = vmatpush1.msra.mxu0 0.0
    %84 = vmatprep.subr.mxu0 0.0
    %85 = vmatpush1.msra.mxu0 0.0
    %86 = vmatprep.subr.mxu0 0.0
    %87 = vmatpush1.msra.mxu0 0.0
    %88 = vmatprep.subr.mxu0 0.0
    %89 = vmatpush1.msra.mxu0 0.0
    %90 = vmatprep.subr.mxu0 0.0
    %91 = vmatpush1.msra.mxu0 0.0
    %92 = vmatprep.subr.mxu0 0.0
    %93 = vmatpush1.msra.mxu0 0.0
    %94 = vmatprep.subr.mxu0 0.0
    %95 = vmatpush1.msra.mxu0 0.0
    %96 = vmatprep.subr.mxu0 0.0
    %97 = vmatpush1.msra.mxu0 0.0
    %98 = vmatprep.subr.mxu0 0.0
    %99 = vmatpush1.msra.mxu0 0.0
    %100 = vmatprep.subr.mxu0 0.0
    %101 = vmatpush1.msra.mxu0 0.0
    %102 = vmatprep.subr.mxu0 0.0
    %103 = vmatpush1.msra.mxu0 0.0
    %104 = vmatprep.subr.mxu0 0.0
    %105 = vmatpush1.msra.mxu0 %v72
    %106 = vmatprep.subr.mxu0 0.0
    %107 = vmatpush1.msra.mxu0 %v71
    %108 = vmatprep.subr.mxu0 0.0
    %109 = vmatpush1.msra.mxu0 %v70
    %110 = vmatprep.subr.mxu0 0.0
    %111 = vmatpush1.msra.mxu0 %v69
    %112 = vmatprep.subr.mxu0 0.0
    %113 = vmatpush2.msra.mxu0 0.0
    %114 = vmatprep.subr.mxu0 0.0
    %115 = vmatpush2.msra.mxu0 0.0
    %116 = vmatprep.subr.mxu0 0.0
    %117 = vmatpush2.msra.mxu0 0.0
    %118 = vmatprep.subr.mxu0 0.0
    %119 = vmatpush2.msra.mxu0 0.0
    %120 = vmatprep.subr.mxu0 0.0
    %121 = vmatpush2.msra.mxu0 0.0
    %122 = vmatprep.subr.mxu0 0.0
    %123 = vmatpush2.msra.mxu0 0.0
    %124 = vmatprep.subr.mxu0 0.0
    %125 = vmatpush2.msra.mxu0 0.0
    %126 = vmatprep.subr.mxu0 0.0
    %127 = vmatpush2.msra.mxu0 0.0
    %128 = vmatprep.subr.mxu0 0.0
    %129 = vmatpush2.msra.mxu0 0.0
    %130 = vmatprep.subr.mxu0 0.0
    %131 = vmatpush2.msra.mxu0 0.0
    %132 = vmatprep.subr.mxu0 0.0
    %133 = vmatpush2.msra.mxu0 0.0
    %134 = vmatprep.subr.mxu0 0.0
    %135 = vmatpush2.msra.mxu0 0.0
    %136 = vmatprep.subr.mxu0 0.0
    %137 = vmatpush2.msra.mxu0 0.0
    %138 = vmatprep.subr.mxu0 0.0
    %139 = vmatpush2.msra.mxu0 0.0
    %140 = vmatprep.subr.mxu0 0.0
    %141 = vmatpush2.msra.mxu0 0.0
    %142 = vmatprep.subr.mxu0 0.0
    %143 = vmatpush2.msra.mxu0 0.0
    %144 = vmatprep.mubr.f32.mxu0 0.0
    %145 = vmatmul.mubr.f32.gmra.mxu0 %v75
    %v146 = vpop.f32.mrf.mxu0
    %v147 = vadd.f32 0.0, %v146
    %v148 = vpop.f32.mrf.mxu0
    %149 = vmatprep.mubr.f32.mxu0 0.0
    %150 = vmatmul.mubr.f32.gmra.mxu0 %v78
    %v151 = vpop.f32.mrf.mxu0
    %v152 = vadd.f32 0.0, %v151
    %v153 = vpop.f32.mrf.mxu0
    %154 = vdwg.mxu0
    %v155 = vadd.f32 %v67, %v147
    %v156 = vadd.f32 %v68, %v152
    %vm157 = vcmask 523264
    %158 = vst.msk [vmem:[#allocation2] sm:$0xff] %vm157, %v155
    %159 = vst.msk [vmem:[#allocation2 + $0x8] sm:$0xff] %vm157, %v156
    %v160 = vld [vmem:[#allocation3] sm:$0xff]
    %v161 = vld [vmem:[#allocation3 + $0x8] sm:$0xff]
    %v162 = vld [vmem:[#allocation9] sm:$0xff]
    %v163 = vld [vmem:[#allocation9 + $0x8] sm:$0xff]
    %v164 = vld [vmem:[#allocation9 + $0x10] sm:$0xff]
    %v165 = vld [vmem:[#allocation9 + $0x18] sm:$0xff]
    %166 = vmatprep.subr.mxu0 0.0
    %167 = vmatpush1.msra.mxu0 0.0
    %168 = vmatprep.subr.mxu0 0.0
    %169 = vmatpush1.msra.mxu0 0.0
    %170 = vmatprep.subr.mxu0 0.0
    %171 = vmatpush1.msra.mxu0 0.0
    %172 = vmatprep.subr.mxu0 0.0
    %173 = vmatpush1.msra.mxu0 0.0
    %174 = vmatprep.subr.mxu0 0.0
    %175 = vmatpush1.msra.mxu0 0.0
    %176 = vmatprep.subr.mxu0 0.0
    %177 = vmatpush1.msra.mxu0 0.0
    %178 = vmatprep.subr.mxu0 0.0
    %179 = vmatpush1.msra.mxu0 0.0
    %180 = vmatprep.subr.mxu0 0.0
    %181 = vmatpush1.msra.mxu0 0.0
    %182 = vmatprep.subr.mxu0 0.0
    %183 = vmatpush1.msra.mxu0 0.0
    %184 = vmatprep.subr.mxu0 0.0
    %185 = vmatpush1.msra.mxu0 0.0
    %186 = vmatprep.subr.mxu0 0.0
    %187 = vmatpush1.msra.mxu0 0.0
    %188 = vmatprep.subr.mxu0 0.0
    %189 = vmatpush1.msra.mxu0 0.0
    %190 = vmatprep.subr.mxu0 0.0
    %191 = vmatpush1.msra.mxu0 %v165
    %192 = vmatprep.subr.mxu0 0.0
    %193 = vmatpush1.msra.mxu0 %v164
    %194 = vmatprep.subr.mxu0 0.0
    %195 = vmatpush1.msra.mxu0 %v163
    %196 = vmatprep.subr.mxu0 0.0
    %197 = vmatpush1.msra.mxu0 %v162
    %198 = vmatprep.subr.mxu0 0.0
    %199 = vmatpush2.msra.mxu0 0.0
    %200 = vmatprep.subr.mxu0 0.0
    %201 = vmatpush2.msra.mxu0 0.0
    %202 = vmatprep.subr.mxu0 0.0
    %203 = vmatpush2.msra.mxu0 0.0
    %204 = vmatprep.subr.mxu0 0.0
    %205 = vmatpush2.msra.mxu0 0.0
    %206 = vmatprep.subr.mxu0 0.0
    %207 = vmatpush2.msra.mxu0 0.0
    %208 = vmatprep.subr.mxu0 0.0
    %209 = vmatpush2.msra.mxu0 0.0
    %210 = vmatprep.subr.mxu0 0.0
    %211 = vmatpush2.msra.mxu0 0.0
    %212 = vmatprep.subr.mxu0 0.0
    %213 = vmatpush2.msra.mxu0 0.0
    %214 = vmatprep.subr.mxu0 0.0
    %215 = vmatpush2.msra.mxu0 0.0
    %216 = vmatprep.subr.mxu0 0.0
    %217 = vmatpush2.msra.mxu0 0.0
    %218 = vmatprep.subr.mxu0 0.0
    %219 = vmatpush2.msra.mxu0 0.0
    %220 = vmatprep.subr.mxu0 0.0
    %221 = vmatpush2.msra.mxu0 0.0
    %222 = vmatprep.subr.mxu0 0.0
    %223 = vmatpush2.msra.mxu0 0.0
    %224 = vmatprep.subr.mxu0 0.0
    %225 = vmatpush2.msra.mxu0 0.0
    %226 = vmatprep.subr.mxu0 0.0
    %227 = vmatpush2.msra.mxu0 0.0
    %228 = vmatprep.subr.mxu0 0.0
    %229 = vmatpush2.msra.mxu0 0.0
    %230 = vmatprep.mubr.f32.mxu0 0.0
    %231 = vmatmul.mubr.f32.gmra.mxu0 %v75
    %v232 = vpop.f32.mrf.mxu0
    %v233 = vadd.f32 0.0, %v232
    %v234 = vpop.f32.mrf.mxu0
    %235 = vmatprep.mubr.f32.mxu0 0.0
    %236 = vmatmul.mubr.f32.gmra.mxu0 %v78
    %v237 = vpop.f32.mrf.mxu0
    %v238 = vadd.f32 0.0, %v237
    %v239 = vpop.f32.mrf.mxu0
    %240 = vdwg.mxu0
    %v241 = vadd.f32 %v160, %v233
    %v242 = vadd.f32 %v161, %v238
    %243 = vst.msk [vmem:[#allocation3] sm:$0xff] %vm157, %v241
    %244 = vst.msk [vmem:[#allocation3 + $0x8] sm:$0xff] %vm157, %v242
    // Predicated region
    $region30: #{tpu_custom_call.1} parent=1 // pred_check
      %p245 = pneg %p56
    $region31: #{tpu_custom_call.1} parent=1 // pred_check_branch
      %247 = sbr.rel (%p245) target = $region33
    $region32: #{tpu_custom_call.1} parent=1 // pred_region
      %v248 = vld [vmem:[#allocation2] sm:$0xff]
      %v249 = vld [vmem:[#allocation2 + $0x8] sm:$0xff]
      %v250 = vxor.u32 %v248, 2147483648
      %v251 = vxor.u32 %v249, 2147483648
      %v252 = vmul.f32 %v250, 1.442695
      %v253 = vpow.pop %v252
      %v254 = vmul.f32 %v251, 1.442695
      %v255 = vpow.pop %v254
      %v256 = vadd.f32 %v253, 1.0
      %v257 = vadd.f32 %v255, 1.0
      %v258 = vrcp.pop %v256
      %v259 = vmul.f32 1.0, %v258
      %v260 = vrcp.pop %v257
      %v261 = vmul.f32 1.0, %v260
      %v262 = vmul.f32 %v248, %v259
      %v263 = vmul.f32 %v249, %v261
      %v264 = vld [vmem:[#allocation3] sm:$0xff]
      %v265 = vld [vmem:[#allocation3 + $0x8] sm:$0xff]
      %v266 = vmul.f32 %v262, %v264
      %v267 = vmul.f32 %v263, %v265
      %268 = vst.msk [vmem:[#allocation10] sm:$0xff] %vm157, %v266
      %269 = vst.msk [vmem:[#allocation10 + $0x8] sm:$0xff] %vm157, %v267
    $region33: #{tpu_custom_call.1} parent=1 // pred_fallthru
      _
    // Predicated region
    $region34: #{tpu_custom_call.1} parent=1 // pred_check
      _
    $region35: #{tpu_custom_call.1} parent=1 // pred_check_branch
      %271 = sbr.rel (0) target = $region37
    $region36: #{tpu_custom_call.1} parent=1 // pred_region
      %s273 = ssub.s32 256, 256
      %274 = vsyncadd [#allocation6], %s273
      %s275 = sshll.u32 [#allocation10], 4
      %s276 = int_to_ptr.vmem [resolvable:$true] %s275
      %281 = dma.vmem_to_hbm [thread:$0]  %s276, 256, %s3, [#allocation6], 128, 128, 8
    $region37: #{tpu_custom_call.1} parent=1 // pred_fallthru
      _
    // Predicated region
    $region38: #{tpu_custom_call.1} parent=1 // pred_check
      _
    $region39: #{tpu_custom_call.1} parent=1 // pred_check_branch
      %283 = sbr.rel (0) target = $region41
    $region40: #{tpu_custom_call.1} parent=1 // pred_region
      %284 = dma.done [#allocation6], 256
    $region41: #{tpu_custom_call.1} parent=1 // pred_fallthru
      _
    %285 = vsyncpa [#allocation5], 1
    %286 = vsyncpa [#allocation8], 1
    %287 = vsyncpa [#allocation6], 1

</llo_original>
